<compile_context>
chip_gen: v5e
topology: v5e:2x2
jax: 0.10.0
libtpu: 0.0.40
codegen_flags: <defaults>
</compile_context>

<pallas_src>
import functools

import jax
import jax.numpy as jnp
from jax.experimental import pallas as pl
from jax.experimental.pallas import tpu as pltpu


def _round_up(x, m):
    return ((x + m - 1) // m) * m


def _round_down(x, m):
    return (x // m) * m


def _vmem_capacity_bytes():
    """Per-core VMEM capacity; conservative v7x fallback if the query fails."""
    try:
        cap = getattr(pltpu.get_tpu_info(), "vmem_capacity_bytes", None)
        if cap:
            return int(cap)
    except Exception:
        pass
    return 64 * 1024 * 1024


def _gap_single_kernel(x_ref, o_ref, *, inv_hw):
    """grid_s == 1 fast path: x_ref (tr, s) -> o_ref (1, tr). No scratch, no pl.when."""
    x = x_ref[...].astype(jnp.float32)
    row_means = jnp.sum(x, axis=1) * inv_hw              # (tr,) f32
    o_ref[...] = row_means.astype(o_ref.dtype)[None, :]  # lane-dense (1, tr) store


def _gap_multi_kernel(x_ref, o_ref, acc_ref, *, inv_hw, s_total, ts, mask_needed):
    """grid_s > 1 path: x_ref (tr, ts) tile, acc_ref (1, tr) f32, o_ref (1, tr)."""
    k = pl.program_id(1)
    last = pl.num_programs(1) - 1

    @pl.when(k == 0)
    def _init():
        acc_ref[...] = jnp.zeros_like(acc_ref)

    x = x_ref[...].astype(jnp.float32)

    if mask_needed:
        # Only the final spatial tile has lanes past the true extent; keep the
        # steady-state step mask-free (no iota/compare/select on the VPU).
        @pl.when(k < last)
        def _accum_plain():
            acc_ref[...] += jnp.sum(x, axis=1)[None, :]

        @pl.when(k == last)
        def _accum_masked():
            col = k * ts + jax.lax.broadcasted_iota(jnp.int32, x.shape, 1)
            xm = jnp.where(col < s_total, x, 0.0)
            acc_ref[...] += jnp.sum(xm, axis=1)[None, :]
    else:
        acc_ref[...] += jnp.sum(x, axis=1)[None, :]

    @pl.when(k == last)
    def _finalize():
        o_ref[...] = (acc_ref[...] * inv_hw).astype(o_ref.dtype)


def global_avg_pool2d(x, *, row_tile=None, spatial_tile=None):
    """Equivalent of F.avg_pool2d(x, kernel_size=x.size()[2:]) for NCHW input."""
    n, c, h, w = x.shape
    r = n * c
    s = h * w
    itemsize = jnp.dtype(x.dtype).itemsize

    x2 = x.reshape(r, s)  # contiguous NCHW -> free metadata reshape

    # ---- generation-aware VMEM budget ---------------------------------------
    vmem_cap = _vmem_capacity_bytes()
    vmem_limit = min(64 * 1024 * 1024, (vmem_cap * 3) // 4)        # 64 MiB v5e/v6e, ~48 MiB v7x
    target_tile_bytes = min(16 * 1024 * 1024, vmem_limit // 4)     # per input buffer

    # Row tiles must be the full row extent or a multiple of 128 (output lane dim).
    ROW_MULT = 128
    tr_min = r if r <= ROW_MULT else ROW_MULT

    # ---- spatial (lane) tile -------------------------------------------------
    if spatial_tile is None:
        # Budget the spatial tile against the minimum legal row tile.
        max_ts = max(128, _round_down(target_tile_bytes // (tr_min * itemsize), 128))
        ts = s if s <= max_ts else max_ts
    else:
        ts = min(int(spatial_tile), s)
        if ts < s:
            ts = _round_up(max(ts, 1), 128)   # keep the (8,128) BlockSpec rule
            if ts >= s:
                ts = s
    grid_s = pl.cdiv(s, ts)
    mask_needed = (s % ts) != 0

    # ---- row (sublane / output-lane) tile -----------------------------------
    ts_vmem = _round_up(ts, 128)
    row_bytes = ts_vmem * itemsize
    if row_tile is not None:
        tr = min(int(row_tile), r)
        if tr < r:
            tr = _round_up(max(tr, 1), ROW_MULT)
            if tr >= r:
                tr = r
    else:
        tr_raw = max(1, target_tile_bytes // row_bytes)
        if tr_raw >= r:
            tr = r
        else:
            tr = max(ROW_MULT, _round_down(tr_raw, ROW_MULT))
            if tr >= r:
                tr = r
        # Prefer >= 2 row tiles so the "parallel" axis shards across both
        # TensorCores on multi-core parts (v7x), as long as each tile still moves
        # enough bytes (>= 512 KiB) to amortize the ~0.35us per-grid-step overhead.
        if tr == r and r > ROW_MULT:
            min_tile_bytes = 512 * 1024
            max_tiles = max(1, (r * row_bytes) // min_tile_bytes)
            n_tiles = min(8, max_tiles, r // ROW_MULT)
            if n_tiles >= 2:
                cand = _round_up(pl.cdiv(r, n_tiles), ROW_MULT)
                if cand < r:
                    tr = cand
    grid_r = pl.cdiv(r, tr)

    inv_hw = 1.0 / float(s)

    # ---- kernel / grid selection ---------------------------------------------
    if grid_s == 1:
        kernel = functools.partial(_gap_single_kernel, inv_hw=inv_hw)
        grid = (grid_r,)
        in_specs = [pl.BlockSpec((tr, ts), lambda i: (i, 0))]
        out_specs = pl.BlockSpec((1, tr), lambda i: (0, i))
        scratch_shapes = []
        dim_sem = ("parallel",)
    else:
        kernel = functools.partial(
            _gap_multi_kernel, inv_hw=inv_hw, s_total=s, ts=ts, mask_needed=mask_needed
        )
        grid = (grid_r, grid_s)
        in_specs = [pl.BlockSpec((tr, ts), lambda i, k: (i, k))]
        out_specs = pl.BlockSpec((1, tr), lambda i, k: (0, i))
        scratch_shapes = [pltpu.VMEM((1, tr), jnp.float32)]
        dim_sem = ("parallel", "arbitrary")

    pooled = pl.pallas_call(
        kernel,
        out_shape=jax.ShapeDtypeStruct((1, r), x.dtype),
        grid_spec=pltpu.PrefetchScalarGridSpec(
            num_scalar_prefetch=0,
            grid=grid,
            in_specs=in_specs,
            out_specs=out_specs,
            scratch_shapes=scratch_shapes,
        ),
        compiler_params=pltpu.CompilerParams(
            dimension_semantics=dim_sem,
            vmem_limit_bytes=vmem_limit,
        ),
        cost_estimate=pl.CostEstimate(
            flops=2 * r * s,
            transcendentals=0,
            bytes_accessed=r * s * itemsize + r * itemsize,
        ),
    )(x2)

    # F.avg_pool2d with kernel_size == spatial size returns (N, C, 1, 1).
    return pooled.reshape(n, c, 1, 1)


if __name__ == "__main__":
    key = jax.random.PRNGKey(0)

    # Primary test: module-consistent small shape (single-tile fast path).
    x = jax.random.normal(key, (2, 4, 16, 16), dtype=jnp.float32)
    out = jax.block_until_ready(global_avg_pool2d(x))
    ref = jnp.mean(x, axis=(2, 3), keepdims=True)
    assert out.shape == (2, 4, 1, 1), out.shape
    assert jnp.allclose(out, ref, atol=1e-5, rtol=1e-5)

    # Secondary test: force small tiles to exercise the multi-step reduction axis,
    # the last-step remainder-lane mask, and partial row / output-lane blocks.
    x2 = jax.random.normal(jax.random.PRNGKey(0), (2, 160, 12, 12), dtype=jnp.float32)
    out2 = jax.block_until_ready(global_avg_pool2d(x2, row_tile=256, spatial_tile=128))
    ref2 = jnp.mean(x2, axis=(2, 3), keepdims=True)
    assert out2.shape == (2, 160, 1, 1), out2.shape
    assert jnp.allclose(out2, ref2, atol=1e-5, rtol=1e-5)

    # Third test: bf16 input through the single-tile fast path (f32 accumulation).
    x3 = jax.random.normal(jax.random.PRNGKey(1), (2, 16, 14, 14), dtype=jnp.bfloat16)
    out3 = jax.block_until_ready(global_avg_pool2d(x3))
    ref3 = jnp.mean(x3.astype(jnp.float32), axis=(2, 3), keepdims=True)
    assert out3.shape == (2, 16, 1, 1), out3.shape
    assert jnp.allclose(out3.astype(jnp.float32), ref3, atol=2e-2, rtol=2e-2)

    print("KERNEL_OK")
</pallas_src>

<mosaic_0001>
module attributes {stable_mosaic.version = 11 : i64} {
  func.func @_gap_single_kernel(%arg0: i32, %arg1: memref<8x256xf32, #tpu.memory_space<vmem>>, %arg2: memref<1x8xf32, #tpu.memory_space<vmem>>) attributes {dimension_semantics = [#tpu.dimension_semantics<parallel>], iteration_bounds = array<i64: 1>, scalar_prefetch = 0 : i64, scratch_operands = 0 : i64, tpu.core_type = #tpu.core_type<tc>, window_params = [{transform_indices = @transform_0, window_bounds = array<i64: 8, 256>}, {transform_indices = @transform_1, window_bounds = array<i64: 1, 8>}]} {
    %c0 = arith.constant 0 : index
    %c0_0 = arith.constant 0 : index
    %0 = vector.load %arg1[%c0, %c0_0] : memref<8x256xf32, #tpu.memory_space<vmem>>, vector<8x256xf32>
    %cst = arith.constant dense<0.000000e+00> : vector<8xf32>
    %1 = vector.multi_reduction <add>, %0, %cst [1] : vector<8x256xf32> to vector<8xf32>
    %cst_1 = arith.constant 3.906250e-03 : f32
    %2 = vector.broadcast %cst_1 : f32 to vector<8xf32>
    %3 = arith.mulf %1, %2 : vector<8xf32>
    %4 = vector.shape_cast %3 : vector<8xf32> to vector<1x8xf32>
    %c0_2 = arith.constant 0 : index
    %c0_3 = arith.constant 0 : index
    %5 = vector.load %arg2[%c0_2, %c0_3] : memref<1x8xf32, #tpu.memory_space<vmem>>, vector<1x8xf32>
    tpu.vector_store %arg2[%c0_2, %c0_3], %4 {strides = array<i32>} : memref<1x8xf32, #tpu.memory_space<vmem>>, vector<1x8xf32>,
    return
  }
  func.func @transform_0(%arg0: i32) -> (i32, i32) {
    %c0_i32 = arith.constant 0 : i32
    %c0_i32_0 = arith.constant 0 : i32
    return %arg0, %c0_i32 : i32, i32
  }
  func.func @transform_1(%arg0: i32) -> (i32, i32) {
    %c0_i32 = arith.constant 0 : i32
    %c0_i32_0 = arith.constant 0 : i32
    return %c0_i32, %arg0 : i32, i32
  }
}

</mosaic_0001>

<llo_original>
// kernel: tpu_custom_call.1
$region0: #{tpu_custom_call.1}
  #allocation0 [shape = 'u32[]', space=smem, size = 0x4, offset = 0x4, fixed_abs, tag = 'smem constant byte address 0x4 - core index']
  #allocation1 [shape = 'u32[72,128]{1,0:T(1,128)}', space=vmem, size = 0x9000, scoped, tag = 'internal scratch']
  %s0 = inlined_call_operand.hbm [shape: f32[8,256], index: 0, kind: input, shape index: {}]
  %s1 = inlined_call_operand.hbm [shape: f32[1,8], index: 1, kind: output, shape index: {}]
  %s2 = sld [smem:[#allocation0]]
  $region18: #{tpu_custom_call.1} parent=0
    _
  %s4 = ssub.s32 1, %s2
  %s5 = scalar_select 0, %s4, %s2
  $region1: #{tpu_custom_call.1} parent=0
    #allocation2 [shape = 'u8[8192]{0}', space=vmem, size = 0x2000, scoped, tag = 'input window, operand 0, single buffered']
    #allocation3 [shape = 's32[1]{0}', space=sflag, size = 0x4, scoped, tag = 'scoped memory for tpu_custom_call.1']
    #allocation4 [shape = 's32[1]{0}', space=sflag, size = 0x4, scoped, tag = 'scoped memory for tpu_custom_call.1']
    #allocation5 [shape = 'u8[512]{0}', space=vmem, size = 0x400, scoped, tag = 'output window, operand 0, single buffered']
    %6 = vsyncpa [#allocation3], 0
    %7 = vsyncpa [#allocation4], 0
    // Predicated region
    $region2: #{tpu_custom_call.1} parent=1 // pred_check
      _
    $region3: #{tpu_custom_call.1} parent=1 // pred_check_branch
      %9 = sbr.rel (0) target = $region5
    $region4: #{tpu_custom_call.1} parent=1 // pred_region
      %11 = vsyncadd [#allocation3], 0
      %s13 = sshll.u32 %s0, 4
      %s14 = int_to_ptr.hbm [resolvable:$true] %s13
      %s15 = sshll.u32 [#allocation2], 4
      %s16 = int_to_ptr.vmem [resolvable:$true] %s15
      %18 = dma.hbm_to_vmem [thread:$0]  %s14, 256, %s16, [#allocation3]
    $region5: #{tpu_custom_call.1} parent=1 // pred_fallthru
      _
    // Predicated region
    $region6: #{tpu_custom_call.1} parent=1 // pred_check
      _
    $region7: #{tpu_custom_call.1} parent=1 // pred_check_branch
      %20 = sbr.rel (0) target = $region9
    $region8: #{tpu_custom_call.1} parent=1 // pred_region
      %22 = dma.done [#allocation3], 256
    $region9: #{tpu_custom_call.1} parent=1 // pred_fallthru
      _
    %v23 = vld [vmem:[#allocation2] sm:$0xff]
    %v24 = vld [vmem:[#allocation2 + $0x8] sm:$0xff]
    %v25 = vadd.f32 %v23, %v24
    %26 = vadd.xlane.f32.xlu0 %v25
    %v27 = vpop.xlane.xlu0 %26
    %v28 = vmul.f32 %v27, 0.00390625
    %v30 = vlaneseq
    %v31 = vand.u32 %v30, 127
    %v32 = vperm.slane %v28, %v31
    %vm34 = vcmask 57344
    %35 = vst.msk [vmem:[#allocation5] sm:$0x1] %vm34, %v32
    // Predicated region
    $region10: #{tpu_custom_call.1} parent=1 // pred_check
      _
    $region11: #{tpu_custom_call.1} parent=1 // pred_check_branch
      %37 = sbr.rel (0) target = $region13
    $region12: #{tpu_custom_call.1} parent=1 // pred_region
      %39 = vsyncadd [#allocation4], 0
      %s41 = sshll.u32 [#allocation5], 4
      %s42 = int_to_ptr.vmem [resolvable:$true] %s41
      %s43 = sshll.u32 %s1, 4
      %s44 = int_to_ptr.hbm [resolvable:$true] %s43
      %46 = dma.vmem_to_hbm [thread:$0]  %s42, 16, %s44, [#allocation4]
    $region13: #{tpu_custom_call.1} parent=1 // pred_fallthru
      _
    // Predicated region
    $region14: #{tpu_custom_call.1} parent=1 // pred_check
      _
    $region15: #{tpu_custom_call.1} parent=1 // pred_check_branch
      %48 = sbr.rel (0) target = $region17
    $region16: #{tpu_custom_call.1} parent=1 // pred_region
      %50 = dma.done [#allocation4], 16
    $region17: #{tpu_custom_call.1} parent=1 // pred_fallthru
      _
    %51 = vsyncpa [#allocation3], 1
    %52 = vsyncpa [#allocation4], 1

</llo_original>
